<compile_context>
chip_gen: v7x
topology: tpu7x:2x2x1
jax: 0.10.0
libtpu: 0.0.40
codegen_flags: <defaults>
</compile_context>

<pallas_src>
import functools
from typing import List, Union

import jax
import jax.numpy as jnp
from jax.experimental import pallas as pl
from jax.experimental.pallas import tpu as pltpu


def _round_up(x: int, m: int) -> int:
    return (x + m - 1) // m * m


# ----------------------------- Pallas kernel --------------------------------
def _linear_kernel(x_ref, wt_ref, b_ref, o_ref):
    """One (tm, tn) output tile: full-D matmul + bias, written exactly once."""
    acc = jnp.dot(x_ref[...], wt_ref[...], preferred_element_type=jnp.float32)
    o_ref[...] = (acc + b_ref[...]).astype(o_ref.dtype)


@functools.partial(jax.jit, static_argnames=("tm", "tn"))
def _pallas_linear_padded(x, wt, bias2d, *, tm: int, tn: int):
    """out = x @ wt + bias.

    x:      (B, D)       float32
    wt:     (D, P_pad)   float32, P_pad % tn == 0  (pre-transposed, pre-padded)
    bias2d: (1, P_pad)   float32
    Returns (B, P_pad); caller slices per head.
    """
    B, D = x.shape
    D2, P_pad = wt.shape
    assert D == D2, "input_dim mismatch"
    assert P_pad % tn == 0

    B_pad = _round_up(B, tm)
    if B_pad != B:
        x = jnp.pad(x, ((0, B_pad - B), (0, 0)))

    grid = (B_pad // tm, P_pad // tn)
    out = pl.pallas_call(
        _linear_kernel,
        out_shape=jax.ShapeDtypeStruct((B_pad, P_pad), x.dtype),
        grid_spec=pltpu.PrefetchScalarGridSpec(
            num_scalar_prefetch=0,
            grid=grid,
            in_specs=[
                # x tile: (tm, D) — full reduction dim resident, no K axis.
                pl.BlockSpec((tm, D), lambda i, j: (i, 0)),
                # W^T tile: (D, tn)
                pl.BlockSpec((D, tn), lambda i, j: (0, j)),
                # bias tile: (1, tn), broadcast over tm rows in-kernel
                pl.BlockSpec((1, tn), lambda i, j: (0, j)),
            ],
            out_specs=pl.BlockSpec((tm, tn), lambda i, j: (i, j)),
        ),
        compiler_params=pltpu.CompilerParams(
            dimension_semantics=("parallel", "parallel"),
        ),
        cost_estimate=pl.CostEstimate(
            flops=2 * B_pad * P_pad * D,
            transcendentals=0,
            bytes_accessed=(B_pad * D + D * P_pad + B_pad * P_pad + P_pad) * 4,
        ),
    )(x, wt, bias2d)
    return out[:B]


# --------------------------- Module-equivalent wrapper -----------------------
class Prototypes:
    """JAX/Pallas mirror of the PyTorch Prototypes module (forward only)."""

    # TODO(synk): gradient-freezing (requires_grad_) and normalize() are
    # training-time parameter bookkeeping with no forward-pass Pallas
    # equivalent; only the forward math is implemented.

    def __init__(
        self,
        input_dim: int = 128,
        n_prototypes: Union[List[int], int] = 3000,
        n_steps_frozen_prototypes: int = 0,
        key: jax.Array = None,
    ):
        self.n_prototypes = (
            n_prototypes if isinstance(n_prototypes, list) else [n_prototypes]
        )
        self._is_single_prototype = isinstance(n_prototypes, int)
        self.n_steps_frozen_prototypes = n_steps_frozen_prototypes
        self.input_dim = input_dim

        # Deterministic init matching nn.Linear's U(-1/sqrt(D), 1/sqrt(D)).
        if key is None:
            key = jax.random.PRNGKey(0)
        self.heads = []
        bound = 1.0 / float(input_dim) ** 0.5
        for p in self.n_prototypes:
            key, wk, bk = jax.random.split(key, 3)
            w = jax.random.uniform(wk, (p, input_dim), jnp.float32, -bound, bound)
            b = jax.random.uniform(bk, (p,), jnp.float32, -bound, bound)
            self.heads.append((w, b))

        # ---- one-time layout prep (no per-call transposes / copies) --------
        # Fuse all heads along the prototype axis: one matmul per forward.
        wt_fused = jnp.concatenate([w.T for (w, _) in self.heads], axis=1)  # (D, Ptot)
        b_fused = jnp.concatenate([b for (_, b) in self.heads], axis=0)     # (Ptot,)
        p_total = wt_fused.shape[1]

        # Lane-dense output tile width: multiple of 128, capped at 512 so a
        # realistic P (e.g. 3000 -> 3072) still yields >= 2 blocks (megacore).
        self._tn = min(_round_up(p_total, 128), 512)
        p_pad = _round_up(p_total, self._tn)
        if p_pad != p_total:
            wt_fused = jnp.pad(wt_fused, ((0, 0), (0, p_pad - p_total)))
            b_fused = jnp.pad(b_fused, (0, p_pad - p_total))

        self._wt_fused = jax.device_put(wt_fused)                # (D, P_pad)
        self._bias_fused = jax.device_put(b_fused.reshape(1, p_pad))  # (1, P_pad)
        self._p_total = p_total

    def __call__(self, x, step=None):
        # _freeze_prototypes_if_required only toggles requires_grad_; it does
        # not change forward values, but keep its argument validation.
        if self.n_steps_frozen_prototypes > 0 and step is None:
            raise ValueError(
                "`n_steps_frozen_prototypes` is greater than 0, please provide "
                "the `step` argument to the `forward()` method."
            )

        # Support arbitrary leading dims like nn.Linear: flatten to (B, D).
        lead_shape = x.shape[:-1]
        x2d = x.reshape(-1, self.input_dim)
        B = x2d.shape[0]

        # Batch tile: multiple of 8, capped at 128 (fills MXU rows, keeps the
        # double-buffered VMEM footprint tiny on every generation incl. v7x).
        tm = min(_round_up(max(B, 1), 8), 128)

        out_full = _pallas_linear_padded(
            x2d, self._wt_fused, self._bias_fused, tm=tm, tn=self._tn
        )

        # Split the fused output back into per-head tensors (drops padding).
        outs = []
        off = 0
        for p in self.n_prototypes:
            outs.append(out_full[:, off:off + p].reshape(*lead_shape, p))
            off += p
        return outs[0] if self._is_single_prototype else outs


# ---------------------------------- main -------------------------------------
if __name__ == "__main__":
    key = jax.random.PRNGKey(0)
    xk, pk, pk2, pk3 = jax.random.split(key, 4)

    D = 128

    # --- single-head case (int n_prototypes -> returns a single tensor) -----
    B, P = 8, 256
    x = jax.random.normal(xk, (B, D), jnp.float32)
    proto = Prototypes(input_dim=D, n_prototypes=P, key=pk)
    out = jax.block_until_ready(proto(x))
    w, b = proto.heads[0]
    ref = x @ w.T + b
    assert out.shape == (B, P)
    assert jnp.allclose(out, ref, atol=1e-4, rtol=1e-4)

    # --- non-tile-aligned shapes (exercise B and P padding paths) -----------
    B2, P2 = 5, 200
    x2 = jax.random.normal(pk3, (B2, D), jnp.float32)
    proto_pad = Prototypes(input_dim=D, n_prototypes=P2, key=pk2)
    out2 = jax.block_until_ready(proto_pad(x2))
    w2, b2 = proto_pad.heads[0]
    assert out2.shape == (B2, P2)
    assert jnp.allclose(out2, x2 @ w2.T + b2, atol=1e-4, rtol=1e-4)

    # --- multi-head (list) case: fused into a single pallas_call ------------
    proto_multi = Prototypes(input_dim=D, n_prototypes=[P, 96], key=pk)
    outs = jax.block_until_ready(proto_multi(x))
    assert isinstance(outs, list) and len(outs) == 2
    for o, (w, b) in zip(outs, proto_multi.heads):
        assert o.shape == (B, w.shape[0])
        assert jnp.allclose(o, x @ w.T + b, atol=1e-4, rtol=1e-4)

    print("KERNEL_OK")
</pallas_src>

<mosaic_0001>
module attributes {stable_mosaic.version = 11 : i64} {
  func.func @_linear_kernel(%arg0: i32, %arg1: i32, %arg2: memref<8x128xf32, #tpu.memory_space<vmem>>, %arg3: memref<128x256xf32, #tpu.memory_space<vmem>>, %arg4: memref<1x256xf32, #tpu.memory_space<vmem>>, %arg5: memref<8x256xf32, #tpu.memory_space<vmem>>) attributes {dimension_semantics = [#tpu.dimension_semantics<parallel>, #tpu.dimension_semantics<parallel>], iteration_bounds = array<i64: 1, 1>, scalar_prefetch = 0 : i64, scratch_operands = 0 : i64, tpu.core_type = #tpu.core_type<tc>, window_params = [{transform_indices = @transform_0, window_bounds = array<i64: 8, 128>}, {transform_indices = @transform_1, window_bounds = array<i64: 128, 256>}, {transform_indices = @transform_2, window_bounds = array<i64: 1, 256>}, {transform_indices = @transform_3, window_bounds = array<i64: 8, 256>}]} {
    %c0 = arith.constant 0 : index
    %c0_0 = arith.constant 0 : index
    %0 = vector.load %arg2[%c0, %c0_0] : memref<8x128xf32, #tpu.memory_space<vmem>>, vector<8x128xf32>
    %c0_1 = arith.constant 0 : index
    %c0_2 = arith.constant 0 : index
    %1 = vector.load %arg3[%c0_1, %c0_2] : memref<128x256xf32, #tpu.memory_space<vmem>>, vector<128x256xf32>
    %cst = arith.constant dense<0.000000e+00> : vector<8x256xf32>
    %2 = tpu.matmul %0, %1, %cst {dimension_numbers = #tpu.dot_dimension_numbers<[1], [0], [0], [1], [0, 0, 1, 1], [], []>} : vector<8x128xf32>, vector<128x256xf32>, vector<8x256xf32> -> vector<8x256xf32>
    %c0_3 = arith.constant 0 : index
    %c0_4 = arith.constant 0 : index
    %3 = vector.load %arg4[%c0_3, %c0_4] : memref<1x256xf32, #tpu.memory_space<vmem>>, vector<1x256xf32>
    %4 = vector.broadcast %3 : vector<1x256xf32> to vector<8x256xf32>
    %5 = arith.addf %2, %4 : vector<8x256xf32>
    %c0_5 = arith.constant 0 : index
    %c0_6 = arith.constant 0 : index
    %6 = vector.load %arg5[%c0_5, %c0_6] : memref<8x256xf32, #tpu.memory_space<vmem>>, vector<8x256xf32>
    tpu.vector_store %arg5[%c0_5, %c0_6], %5 {strides = array<i32>} : memref<8x256xf32, #tpu.memory_space<vmem>>, vector<8x256xf32>,
    return
  }
  func.func @transform_0(%arg0: i32, %arg1: i32) -> (i32, i32) {
    %c0_i32 = arith.constant 0 : i32
    %c0_i32_0 = arith.constant 0 : i32
    return %arg0, %c0_i32 : i32, i32
  }
  func.func @transform_1(%arg0: i32, %arg1: i32) -> (i32, i32) {
    %c0_i32 = arith.constant 0 : i32
    %c0_i32_0 = arith.constant 0 : i32
    return %c0_i32, %arg1 : i32, i32
  }
  func.func @transform_2(%arg0: i32, %arg1: i32) -> (i32, i32) {
    %c0_i32 = arith.constant 0 : i32
    %c0_i32_0 = arith.constant 0 : i32
    return %c0_i32, %arg1 : i32, i32
  }
  func.func @transform_3(%arg0: i32, %arg1: i32) -> (i32, i32) {
    %c0_i32 = arith.constant 0 : i32
    return %arg0, %arg1 : i32, i32
  }
}

</mosaic_0001>

<llo_original>
// kernel: _pallas_linear_padded.1
$region0: #{_pallas_linear_padded.1}
  #allocation0 [shape = 'u32[]', space=smem, size = 0x4, offset = 0x4, fixed_abs, tag = 'smem constant byte address 0x4 - core index']
  #allocation1 [shape = 'u32[144,128]{1,0:T(1,128)}', space=vmem, size = 0x12000, scoped, tag = 'internal scratch']
  %s0 = inlined_call_operand.hbm [shape: f32[8,128], index: 0, kind: input, shape index: {}]
  %s1 = inlined_call_operand.hbm [shape: f32[128,256], index: 1, kind: input, shape index: {}]
  %s2 = inlined_call_operand.vmem [shape: f32[1,256], index: 2, kind: input, shape index: {}]
  %s3 = inlined_call_operand.hbm [shape: f32[8,256], index: 3, kind: output, shape index: {}]
  %s4 = sld [smem:[#allocation0]]
  $region30: #{_pallas_linear_padded.1} parent=0
    _
  %s6 = ssub.s32 1, %s4
  %s7 = scalar_select 0, %s6, %s4
  $region1: #{_pallas_linear_padded.1} parent=0
    #allocation2 [shape = 'u8[4096]{0}', space=vmem, size = 0x1000, scoped, tag = 'input window, operand 0, single buffered']
    #allocation3 [shape = 's32[1]{0}', space=sflag, size = 0x4, scoped, tag = 'scoped memory for _pallas_linear_padded.1']
    #allocation4 [shape = 's32[1]{0}', space=sflag, size = 0x4, scoped, tag = 'scoped memory for _pallas_linear_padded.1']
    #allocation5 [shape = 'u8[131072]{0}', space=vmem, size = 0x20000, scoped, tag = 'input window, operand 1, single buffered']
    #allocation6 [shape = 's32[1]{0}', space=sflag, size = 0x4, scoped, tag = 'scoped memory for _pallas_linear_padded.1']
    #allocation7 [shape = 'u8[8192]{0}', space=vmem, size = 0x2000, scoped, tag = 'output window, operand 0, single buffered']
    %8 = vsyncpa [#allocation3], 0
    %9 = vsyncpa [#allocation6], 0
    %10 = vsyncpa [#allocation4], 0
    // Predicated region
    $region2: #{_pallas_linear_padded.1} parent=1 // pred_check
      _
    $region3: #{_pallas_linear_padded.1} parent=1 // pred_check_branch
      %12 = sbr.rel (0) target = $region5
    $region4: #{_pallas_linear_padded.1} parent=1 // pred_region
      %s14 = ssub.s32 128, 128
      %15 = vsyncadd [#allocation3], %s14
      %s17 = sshll.u32 [#allocation2], 4
      %s18 = int_to_ptr.vmem [resolvable:$true] %s17
      %20 = dma.hbm_to_vmem [thread:$0]  %s0, 128, %s18, [#allocation3]
    $region5: #{_pallas_linear_padded.1} parent=1 // pred_fallthru
      _
    // Predicated region
    $region6: #{_pallas_linear_padded.1} parent=1 // pred_check
      _
    $region7: #{_pallas_linear_padded.1} parent=1 // pred_check_branch
      %22 = sbr.rel (0) target = $region9
    $region8: #{_pallas_linear_padded.1} parent=1 // pred_region
      %s24 = ssub.s32 4096, 4096
      %25 = vsyncadd [#allocation6], %s24
      %s26 = sshll.u32 [#allocation5], 4
      %s27 = int_to_ptr.vmem [resolvable:$true] %s26
      %32 = dma.hbm_to_vmem [thread:$0]  %s1, 4096, %s27, [#allocation6], 256, 256, 16
    $region9: #{_pallas_linear_padded.1} parent=1 // pred_fallthru
      _
    // Predicated region
    $region10: #{_pallas_linear_padded.1} parent=1 // pred_check
      _
    $region11: #{_pallas_linear_padded.1} parent=1 // pred_check_branch
      %34 = sbr.rel (0) target = $region13
    $region12: #{_pallas_linear_padded.1} parent=1 // pred_region
      _
    $region13: #{_pallas_linear_padded.1} parent=1 // pred_fallthru
      _
    // Predicated region
    $region14: #{_pallas_linear_padded.1} parent=1 // pred_check
      _
    $region15: #{_pallas_linear_padded.1} parent=1 // pred_check_branch
      %36 = sbr.rel (0) target = $region17
    $region16: #{_pallas_linear_padded.1} parent=1 // pred_region
      %37 = dma.done [#allocation3], 128
    $region17: #{_pallas_linear_padded.1} parent=1 // pred_fallthru
      _
    // Predicated region
    $region18: #{_pallas_linear_padded.1} parent=1 // pred_check
      _
    $region19: #{_pallas_linear_padded.1} parent=1 // pred_check_branch
      %39 = sbr.rel (0) target = $region21
    $region20: #{_pallas_linear_padded.1} parent=1 // pred_region
      %40 = dma.done [#allocation6], 4096
    $region21: #{_pallas_linear_padded.1} parent=1 // pred_fallthru
      _
    %v41 = vld [vmem:[#allocation2] sm:$0xff]
    %v42 = vld [vmem:[#allocation5] sm:$0xff]
    %v43 = vld [vmem:[#allocation5 + $0x8] sm:$0xff]
    %v44 = vld [vmem:[#allocation5 + $0x10] sm:$0xff]
    %v45 = vld [vmem:[#allocation5 + $0x18] sm:$0xff]
    %v46 = vld [vmem:[#allocation5 + $0x20] sm:$0xff]
    %v47 = vld [vmem:[#allocation5 + $0x28] sm:$0xff]
    %v48 = vld [vmem:[#allocation5 + $0x30] sm:$0xff]
    %v49 = vld [vmem:[#allocation5 + $0x38] sm:$0xff]
    %v50 = vld [vmem:[#allocation5 + $0x40] sm:$0xff]
    %v51 = vld [vmem:[#allocation5 + $0x48] sm:$0xff]
    %v52 = vld [vmem:[#allocation5 + $0x50] sm:$0xff]
    %v53 = vld [vmem:[#allocation5 + $0x58] sm:$0xff]
    %v54 = vld [vmem:[#allocation5 + $0x60] sm:$0xff]
    %v55 = vld [vmem:[#allocation5 + $0x68] sm:$0xff]
    %v56 = vld [vmem:[#allocation5 + $0x70] sm:$0xff]
    %v57 = vld [vmem:[#allocation5 + $0x78] sm:$0xff]
    %v58 = vld [vmem:[#allocation5 + $0x80] sm:$0xff]
    %v59 = vld [vmem:[#allocation5 + $0x88] sm:$0xff]
    %v60 = vld [vmem:[#allocation5 + $0x90] sm:$0xff]
    %v61 = vld [vmem:[#allocation5 + $0x98] sm:$0xff]
    %v62 = vld [vmem:[#allocation5 + $0xa0] sm:$0xff]
    %v63 = vld [vmem:[#allocation5 + $0xa8] sm:$0xff]
    %v64 = vld [vmem:[#allocation5 + $0xb0] sm:$0xff]
    %v65 = vld [vmem:[#allocation5 + $0xb8] sm:$0xff]
    %v66 = vld [vmem:[#allocation5 + $0xc0] sm:$0xff]
    %v67 = vld [vmem:[#allocation5 + $0xc8] sm:$0xff]
    %v68 = vld [vmem:[#allocation5 + $0xd0] sm:$0xff]
    %v69 = vld [vmem:[#allocation5 + $0xd8] sm:$0xff]
    %v70 = vld [vmem:[#allocation5 + $0xe0] sm:$0xff]
    %v71 = vld [vmem:[#allocation5 + $0xe8] sm:$0xff]
    %v72 = vld [vmem:[#allocation5 + $0xf0] sm:$0xff]
    %v73 = vld [vmem:[#allocation5 + $0xf8] sm:$0xff]
    %v74 = vld [vmem:[%s2] sm:$0x3]
    %v76 = vlaneseq
    %v77 = vshrl.u32 %v76, 7
    %v78 = vsub.s32 0, %v77
    %v79 = vrot.slane %v74, %v78
    %v80 = vlaneseq
    %v81 = vshrl.u32 %v80, 7
    %v82 = vsub.s32 1, %v81
    %v83 = vrot.slane %v74, %v82
    %86 = vmatprep.subr.mxu0 %v43
    %87 = vmatpush1.msra.mxu0 %v42
    %88 = vmatprep.subr.mxu0 %v45
    %89 = vmatpush1.msra.mxu0 %v44
    %90 = vmatprep.subr.mxu0 %v47
    %91 = vmatpush1.msra.mxu0 %v46
    %92 = vmatprep.subr.mxu0 %v49
    %93 = vmatpush1.msra.mxu0 %v48
    %94 = vmatprep.subr.mxu0 %v51
    %95 = vmatpush1.msra.mxu0 %v50
    %96 = vmatprep.subr.mxu0 %v53
    %97 = vmatpush1.msra.mxu0 %v52
    %98 = vmatprep.subr.mxu0 %v55
    %99 = vmatpush1.msra.mxu0 %v54
    %100 = vmatprep.subr.mxu0 %v57
    %101 = vmatpush1.msra.mxu0 %v56
    %102 = vmatprep.subr.mxu0 %v59
    %103 = vmatpush1.msra.mxu0 %v58
    %104 = vmatprep.subr.mxu0 %v61
    %105 = vmatpush1.msra.mxu0 %v60
    %106 = vmatprep.subr.mxu0 %v63
    %107 = vmatpush1.msra.mxu0 %v62
    %108 = vmatprep.subr.mxu0 %v65
    %109 = vmatpush1.msra.mxu0 %v64
    %110 = vmatprep.subr.mxu0 %v67
    %111 = vmatpush1.msra.mxu0 %v66
    %112 = vmatprep.subr.mxu0 %v69
    %113 = vmatpush1.msra.mxu0 %v68
    %114 = vmatprep.subr.mxu0 %v71
    %115 = vmatpush1.msra.mxu0 %v70
    %116 = vmatprep.subr.mxu0 %v73
    %117 = vmatpush1.msra.mxu0 %v72
    %118 = vmatprep.subr.mxu0 0.0
    %119 = vmatpush1.msra.mxu0 0.0
    %120 = vmatprep.subr.mxu0 0.0
    %121 = vmatpush1.msra.mxu0 0.0
    %122 = vmatprep.subr.mxu0 0.0
    %123 = vmatpush1.msra.mxu0 0.0
    %124 = vmatprep.subr.mxu0 0.0
    %125 = vmatpush1.msra.mxu0 0.0
    %126 = vmatprep.subr.mxu0 0.0
    %127 = vmatpush1.msra.mxu0 0.0
    %128 = vmatprep.subr.mxu0 0.0
    %129 = vmatpush1.msra.mxu0 0.0
    %130 = vmatprep.subr.mxu0 0.0
    %131 = vmatpush1.msra.mxu0 0.0
    %132 = vmatprep.subr.mxu0 0.0
    %133 = vmatpush1.msra.mxu0 0.0
    %134 = vmatprep.subr.mxu0 0.0
    %135 = vmatpush1.msra.mxu0 0.0
    %136 = vmatprep.subr.mxu0 0.0
    %137 = vmatpush1.msra.mxu0 0.0
    %138 = vmatprep.subr.mxu0 0.0
    %139 = vmatpush1.msra.mxu0 0.0
    %140 = vmatprep.subr.mxu0 0.0
    %141 = vmatpush1.msra.mxu0 0.0
    %142 = vmatprep.subr.mxu0 0.0
    %143 = vmatpush1.msra.mxu0 0.0
    %144 = vmatprep.subr.mxu0 0.0
    %145 = vmatpush1.msra.mxu0 0.0
    %146 = vmatprep.subr.mxu0 0.0
    %147 = vmatpush1.msra.mxu0 0.0
    %148 = vmatprep.subr.mxu0 0.0
    %149 = vmatpush1.msra.mxu0 0.0
    %150 = vmatprep.mubr.f32.mxu0 0.0
    %151 = vmatmul.mubr.f32.gmra.mrb[0].mxu0 %v41
    %v152 = vpop.f32.mrb[0].mxu0
    %v153 = vadd.f32 %v79, %v152
    %v154 = vpop.f32.mrb[0].mxu0
    %v155 = vadd.f32 %v83, %v154
    %156 = vdwg.mxu0
    %157 = vst [vmem:[#allocation7] sm:$0xff] %v153
    %158 = vst [vmem:[#allocation7 + $0x8] sm:$0xff] %v155
    // Predicated region
    $region22: #{_pallas_linear_padded.1} parent=1 // pred_check
      _
    $region23: #{_pallas_linear_padded.1} parent=1 // pred_check_branch
      %160 = sbr.rel (0) target = $region25
    $region24: #{_pallas_linear_padded.1} parent=1 // pred_region
      %s162 = ssub.s32 256, 256
      %163 = vsyncadd [#allocation4], %s162
      %s165 = sshll.u32 [#allocation7], 4
      %s166 = int_to_ptr.vmem [resolvable:$true] %s165
      %168 = dma.vmem_to_hbm [thread:$0]  %s166, 256, %s3, [#allocation4]
    $region25: #{_pallas_linear_padded.1} parent=1 // pred_fallthru
      _
    // Predicated region
    $region26: #{_pallas_linear_padded.1} parent=1 // pred_check
      _
    $region27: #{_pallas_linear_padded.1} parent=1 // pred_check_branch
      %170 = sbr.rel (0) target = $region29
    $region28: #{_pallas_linear_padded.1} parent=1 // pred_region
      %171 = dma.done [#allocation4], 256
    $region29: #{_pallas_linear_padded.1} parent=1 // pred_fallthru
      _
    %172 = vsyncpa [#allocation3], 1
    %173 = vsyncpa [#allocation6], 1
    %174 = vsyncpa [#allocation4], 1

</llo_original>
